<compile_context>
chip_gen: v7x
topology: tpu7x:2x2x1
jax: 0.10.0
libtpu: 0.0.40
codegen_flags: <defaults>
</compile_context>

<pallas_src>
import jax
import jax.numpy as jnp
from jax.experimental import pallas as pl
from jax.experimental.pallas import tpu as pltpu

_LANE = 128
_CHUNK_BYTES = 32 * 1024 * 1024   # target bytes per DMA chunk (16-64 MiB sweet spot)
_MAX_INFLIGHT = 8                 # DMA-semaphore ring depth
_MIN_CHUNKS_WANTED = 4            # re-view flat if dim0 can't give this many chunks


def _largest_divisor_leq(m: int, cap: int) -> int:
    for d in range(min(m, cap), 0, -1):
        if m % d == 0:
            return d
    return 1


def _plan_chunks(shape, itemsize):
    """Static (start, size) chunks along dim 0, targeting ~_CHUNK_BYTES each."""
    dim0 = shape[0]
    rest = 1
    for d in shape[1:]:
        rest *= d
    row_bytes = max(rest * itemsize, 1)
    total_bytes = dim0 * row_bytes
    if total_bytes <= _CHUNK_BYTES or dim0 <= 1 or len(shape) == 1:
        # Small array, unsplittable leading dim, or 1-D (dim0 is the lane dim):
        # one whole-ref DMA is correct and already near the HBM floor.
        return [(0, dim0)]
    rows_per_chunk = max(1, _CHUNK_BYTES // row_bytes)
    if len(shape) == 2:
        # dim 0 is the sublane (second-minor) dim: keep chunk starts aligned to
        # the worst-case sublane quantum (32 covers 1-byte dtypes).
        rows_per_chunk = (rows_per_chunk // 32) * 32
        if rows_per_chunk == 0:
            return [(0, dim0)]
    chunks = []
    start = 0
    while start < dim0:
        size = min(rows_per_chunk, dim0 - start)
        chunks.append((start, size))
        start += size
    return chunks


def _dma_copy(view: jax.Array, chunks) -> jax.Array:
    """One pallas_call copying `view` via chunked HBM->HBM async DMA."""
    k = min(_MAX_INFLIGHT, len(chunks))

    def kernel(x_ref, o_ref, sems):
        descs = []
        for i, (start, size) in enumerate(chunks):   # static unroll at trace time
            if i >= k:
                descs[i - k].wait()                  # free this semaphore slot
            d = pltpu.make_async_copy(
                x_ref.at[pl.ds(start, size)],
                o_ref.at[pl.ds(start, size)],
                sems.at[i % k],
            )
            d.start()
            descs.append(d)
        for d in descs[max(0, len(descs) - k):]:
            d.wait()

    return pl.pallas_call(
        kernel,
        out_shape=jax.ShapeDtypeStruct(view.shape, view.dtype),
        in_specs=[pl.BlockSpec(memory_space=pl.ANY)],
        out_specs=pl.BlockSpec(memory_space=pl.ANY),
        scratch_shapes=[pltpu.SemaphoreType.DMA((k,))],
    )(view)


def identity(x: jax.Array) -> jax.Array:
    """Pallas identity: returns an array equal to x (same shape, dtype)."""
    # TODO(synk): if the call-site contract allows it, `return x` is the true
    # zero-cost identity; we still run the copy kernel as the exercise asks.
    orig_shape = x.shape
    if x.size == 0:
        return x

    view = x.reshape(1) if x.ndim == 0 else x
    itemsize = jnp.dtype(x.dtype).itemsize
    total_bytes = view.size * itemsize
    chunks = _plan_chunks(view.shape, itemsize)

    # Large array whose leading dim cannot be split into enough chunks: re-view
    # it as a wide lane-dense 2D slab (free reshape of contiguous data) so
    # several DMA engines can be kept in flight.
    if (total_bytes > _CHUNK_BYTES
            and len(chunks) < _MIN_CHUNKS_WANTED
            and view.size % _LANE == 0):
        cols = _LANE * _largest_divisor_leq(view.size // _LANE, 64)
        rows = view.size // cols
        if rows > len(chunks):
            view = view.reshape(rows, cols)
            chunks = _plan_chunks(view.shape, itemsize)

    out = _dma_copy(view, chunks)
    return out.reshape(orig_shape)


if __name__ == "__main__":
    key = jax.random.PRNGKey(0)
    k1, k2 = jax.random.split(key)

    # Primary case (small NCHW-like input).
    x = jax.random.normal(k1, (2, 4, 16, 16), dtype=jnp.float32)
    y = identity(x)
    jax.block_until_ready(y)
    assert y.shape == x.shape and y.dtype == x.dtype
    assert bool(jnp.all(y == x))

    # Ragged / odd-size case: same 1-read + 1-write path (no pad, no slice).
    x2 = jax.random.normal(k2, (3, 5, 7), dtype=jnp.float32)
    y2 = identity(x2)
    jax.block_until_ready(y2)
    assert y2.shape == x2.shape and y2.dtype == x2.dtype
    assert bool(jnp.all(y2 == x2))

    print("KERNEL_OK")
</pallas_src>

<mosaic_0001>
module attributes {stable_mosaic.version = 11 : i64} {
  func.func @kernel(%arg0: memref<2x4x16x16xf32, #tpu.memory_space<any>>, %arg1: memref<2x4x16x16xf32, #tpu.memory_space<any>>, %arg2: memref<1x!tpu.dma_semaphore, #tpu.memory_space<semaphore_mem>>) attributes {dimension_semantics = [], scalar_prefetch = 0 : i64, scratch_operands = 1 : i64, tpu.core_type = #tpu.core_type<tc>} {
    %c0_i32 = arith.constant 0 : i32
    %c0_i32_0 = arith.constant 0 : i32
    %c0_i32_1 = arith.constant 0 : i32
    %c0_i32_2 = arith.constant 0 : i32
    %c0_i32_3 = arith.constant 0 : i32
    %0 = tpu.memref_slice %arg0[%c0_i32_0, %c0_i32_1, %c0_i32_2, %c0_i32_3] : memref<2x4x16x16xf32, #tpu.memory_space<any>> -> memref<2x4x16x16xf32, #tpu.memory_space<any>>
    %c0_i32_4 = arith.constant 0 : i32
    %c0_i32_5 = arith.constant 0 : i32
    %c0_i32_6 = arith.constant 0 : i32
    %c0_i32_7 = arith.constant 0 : i32
    %1 = tpu.memref_slice %arg1[%c0_i32_4, %c0_i32_5, %c0_i32_6, %c0_i32_7] : memref<2x4x16x16xf32, #tpu.memory_space<any>> -> memref<2x4x16x16xf32, #tpu.memory_space<any>>
    %2 = tpu.memref_slice %arg2[%c0_i32] : memref<1x!tpu.dma_semaphore, #tpu.memory_space<semaphore_mem>> -> memref<1x!tpu.dma_semaphore, #tpu.memory_space<semaphore_mem>>
    %3 = tpu.memref_squeeze %2 : memref<1x!tpu.dma_semaphore, #tpu.memory_space<semaphore_mem>> -> memref<!tpu.dma_semaphore, #tpu.memory_space<semaphore_mem>>
    tpu.enqueue_dma source(%0 : memref<2x4x16x16xf32, #tpu.memory_space<any>>) target(%1 : memref<2x4x16x16xf32, #tpu.memory_space<any>>) target_semaphore(%3 : memref<!tpu.dma_semaphore, #tpu.memory_space<semaphore_mem>>)
    %c0_i32_8 = arith.constant 0 : i32
    %c0_i32_9 = arith.constant 0 : i32
    %c0_i32_10 = arith.constant 0 : i32
    %c0_i32_11 = arith.constant 0 : i32
    %c0_i32_12 = arith.constant 0 : i32
    %4 = tpu.memref_slice %arg0[%c0_i32_9, %c0_i32_10, %c0_i32_11, %c0_i32_12] : memref<2x4x16x16xf32, #tpu.memory_space<any>> -> memref<2x4x16x16xf32, #tpu.memory_space<any>>
    %c0_i32_13 = arith.constant 0 : i32
    %c0_i32_14 = arith.constant 0 : i32
    %c0_i32_15 = arith.constant 0 : i32
    %c0_i32_16 = arith.constant 0 : i32
    %5 = tpu.memref_slice %arg1[%c0_i32_13, %c0_i32_14, %c0_i32_15, %c0_i32_16] : memref<2x4x16x16xf32, #tpu.memory_space<any>> -> memref<2x4x16x16xf32, #tpu.memory_space<any>>
    %6 = tpu.memref_slice %arg2[%c0_i32_8] : memref<1x!tpu.dma_semaphore, #tpu.memory_space<semaphore_mem>> -> memref<1x!tpu.dma_semaphore, #tpu.memory_space<semaphore_mem>>
    %7 = tpu.memref_squeeze %6 : memref<1x!tpu.dma_semaphore, #tpu.memory_space<semaphore_mem>> -> memref<!tpu.dma_semaphore, #tpu.memory_space<semaphore_mem>>
    tpu.wait_dma2 semaphore(%7 : memref<!tpu.dma_semaphore, #tpu.memory_space<semaphore_mem>>) src(%4 : memref<2x4x16x16xf32, #tpu.memory_space<any>>) dst(%5 : memref<2x4x16x16xf32, #tpu.memory_space<any>>)
    return
  }
}

</mosaic_0001>

<llo_original>
// kernel: tpu_custom_call.1
$region0: #{tpu_custom_call.1}
  #allocation0 [shape = 'u32[]', space=smem, size = 0x4, offset = 0x4, fixed_abs, tag = 'smem constant byte address 0x4 - core index']
  #allocation1 [shape = 'u32[144,128]{1,0:T(1,128)}', space=vmem, size = 0x12000, scoped, tag = 'internal scratch']
  #allocation2 [shape = 's32[1]{0}', space=sflag, size = 0x4, scoped, tag = 'scratch operand']
  #allocation3 [shape = 's32[]', space=sflag, size = 0x4, offset = 0, fixed_abs, tag = 'sflag constant byte address 0x0 - dummy sync flag']
  #allocation4 [shape = 'u32[0]{0}', space=smem, size = 0, offset = 0, fixed_abs, tag = 'smem constant byte address 0x0 - null']
  %s0 = inlined_call_operand.hbm [shape: f32[2,4,16,16], index: 0, kind: input, shape index: {}]
  %s1 = inlined_call_operand.hbm [shape: f32[2,4,16,16], index: 1, kind: output, shape index: {}]
  %s2 = sld [smem:[#allocation0]]
  $region2: #{tpu_custom_call.1} parent=0
    _
  %s4 = ssub.s32 1, %s2
  %s5 = scalar_select 0, %s4, %s2
  %s7 = sshll.u32 1, 14
  %s8 = sxor.u32 4294967295, %s7
  %s11 = sshll.u32 3, 24
  %s12 = sxor.u32 4294967295, %s11
  %s13 = sand.u32 0, %s12
  %s15 = sor.u32 %s13, 0
  %18 = dma.general %s0, 2048, %s1, [#allocation2], [#allocation3], [#allocation4], %s15, 0
  %s19 = smul.u32 2, 4
  %s20 = smul.u32 %s19, 16
  %s21 = smul.u32 %s20, 1
  %s22 = sshll.u32 %s21, 4
  %23 = dma.done [#allocation2], %s22
  %24 = vsyncmov [#allocation2]
  %s25 = vpop.sfrf %24
  %p26 = scmp.eq.s32.totalorder %s25, 0
  %p27 = pneg %p26
  %29 = shalt.err (%p27)

</llo_original>
